<compile_context>
chip_gen: v7x
topology: tpu7x:2x2x1
jax: 0.10.0
libtpu: 0.0.40
codegen_flags: <defaults>
</compile_context>

<pallas_src>
import functools

import jax
import jax.numpy as jnp
import numpy as np
from jax.experimental import pallas as pl
from jax.experimental.pallas import tpu as pltpu


def _se_kernel(x_ref, w1t_ref, b1_ref, w2t_ref, b2_ref, wc_ref, bc_ref, o_ref,
               *, inv_hw):
    # x_ref block: (Bb, C, HW), float32
    xv = x_ref[...]

    # ---- SpatialSE: global average pool + two batched matmuls ----
    pooled = jnp.sum(xv, axis=-1) * inv_hw                             # (Bb, C)
    h1 = jnp.dot(pooled, w1t_ref[...], preferred_element_type=jnp.float32)
    h1 = jnp.maximum(h1 + b1_ref[...], 0.0)                            # (Bb, Cr)
    s = jnp.dot(h1, w2t_ref[...], preferred_element_type=jnp.float32)
    s = jax.nn.sigmoid(s + b2_ref[...])                                # (Bb, C)

    # ---- DepthSE: 1x1 conv (C -> 1) as VPU broadcast-mul + sublane reduce ----
    d = jnp.sum(wc_ref[...][None, :, :] * xv, axis=1, keepdims=True)   # (Bb,1,HW)
    d = jax.nn.sigmoid(d + bc_ref[0, 0])

    # ---- combine:  s*x + d*x == (s + d) * x ----
    o_ref[...] = (s[:, :, None] + d) * xv


def _pick_block_batch(B, C, HW, itemsize, vmem_budget=24 * 1024 * 1024):
    """Largest batch-block that fits VMEM (in+out, double-buffered) while
    keeping at least 2 grid steps (v7x megacore) and dividing B evenly."""
    per_b = 4 * C * HW * itemsize          # input + output blocks, 2x buffered
    cap = max(1, vmem_budget // per_b)
    cap = min(int(cap), max(1, B // 2))    # leave >= 2 grid steps when B >= 2
    bb = 1
    for cand in range(1, cap + 1):
        if B % cand == 0:
            bb = cand
    return bb


def squeeze_excitation(x, params):
    """x: (B, C, H, W) float32. params: dict of weights (see init below)."""
    B, C, H, W = x.shape
    HW = H * W
    x2 = x.reshape(B, C, HW)

    w1, b1, w2, b2, wc, bc = (params["w1"], params["b1"], params["w2"],
                              params["b2"], params["wc"], params["bc"])
    Cr = w1.shape[0]

    # Pre-transpose / reshape once in the wrapper so the kernel does
    # (Bb,C)@(C,Cr) and (Bb,Cr)@(Cr,C) batched matmuls and a broadcast-mul.
    w1t = w1.T                        # (C, Cr)
    w2t = w2.T                        # (Cr, C)
    b1r = b1.reshape(1, Cr)
    b2r = b2.reshape(1, C)
    wcc = wc.reshape(C, 1)            # 1x1 conv weight as a channel column
    bcs = bc.reshape(1, 1)            # scalar, lives in SMEM

    Bb = _pick_block_batch(B, C, HW, x2.dtype.itemsize)
    grid = (B // Bb,)

    kernel = functools.partial(_se_kernel, inv_hw=float(1.0 / HW))
    bcast2 = lambda b: (0, 0)         # parameters shared across the batch grid

    nbytes = int(x2.dtype.itemsize)
    cost = pl.CostEstimate(
        flops=int(4 * B * C * HW + 4 * B * C * Cr),
        transcendentals=int(B * (C + HW)),
        bytes_accessed=int(2 * B * C * HW * nbytes
                           + (2 * C * Cr + 2 * C + Cr + 1) * 4),
    )

    out = pl.pallas_call(
        kernel,
        out_shape=jax.ShapeDtypeStruct((B, C, HW), x2.dtype),
        grid_spec=pltpu.PrefetchScalarGridSpec(
            num_scalar_prefetch=0,
            grid=grid,
            in_specs=[
                pl.BlockSpec((Bb, C, HW), lambda b: (b, 0, 0)),     # x
                pl.BlockSpec((C, Cr), bcast2),                      # w1^T
                pl.BlockSpec((1, Cr), bcast2),                      # b1
                pl.BlockSpec((Cr, C), bcast2),                      # w2^T
                pl.BlockSpec((1, C), bcast2),                       # b2
                pl.BlockSpec((C, 1), bcast2),                       # wc
                pl.BlockSpec(memory_space=pltpu.MemorySpace.SMEM),  # bc scalar
            ],
            out_specs=pl.BlockSpec((Bb, C, HW), lambda b: (b, 0, 0)),
        ),
        compiler_params=pltpu.CompilerParams(
            dimension_semantics=("parallel",),
            vmem_limit_bytes=32 * 1024 * 1024),
        cost_estimate=cost,
    )(x2, w1t, b1r, w2t, b2r, wcc, bcs)

    return out.reshape(B, C, H, W)


def init_params(key, channels, ratio=8):
    """Deterministic init mimicking PyTorch defaults (uniform +-1/sqrt(fan_in))."""
    cr = channels // ratio
    ks = jax.random.split(key, 6)

    def u(k, shape, fan_in):
        bound = 1.0 / np.sqrt(fan_in)
        return jax.random.uniform(k, shape, jnp.float32, -bound, bound)

    return {
        # SpatialSE: Linear(C -> C//ratio), Linear(C//ratio -> C)
        "w1": u(ks[0], (cr, channels), channels),
        "b1": u(ks[1], (cr, 1), channels),
        "w2": u(ks[2], (channels, cr), cr),
        "b2": u(ks[3], (channels, 1), cr),
        # DepthSE: Conv2d(C -> 1, kernel_size=1)
        "wc": u(ks[4], (1, channels), channels),
        "bc": u(ks[5], (1, 1), channels),
    }


def reference(x, p):
    """Pure-JAX reference matching the PyTorch module."""
    B, C, H, W = x.shape
    # SpatialSE
    pooled = jnp.mean(x, axis=(2, 3))                              # (B, C)
    h = jnp.maximum(pooled @ p["w1"].T + p["b1"][:, 0], 0.0)       # (B, Cr)
    s = jax.nn.sigmoid(h @ p["w2"].T + p["b2"][:, 0])              # (B, C)
    spatial = s[:, :, None, None] * x
    # DepthSE (1x1 conv C->1)
    d = jnp.einsum("bchw,c->bhw", x, p["wc"][0]) + p["bc"][0, 0]
    depth = jax.nn.sigmoid(d)[:, None, :, :] * x
    return spatial + depth


if __name__ == "__main__":
    key = jax.random.PRNGKey(0)
    k_x, k_p = jax.random.split(key)

    B, C, H, W = 2, 16, 16, 16   # channels divisible by ratio=8
    x = jax.random.normal(k_x, (B, C, H, W), jnp.float32)
    params = init_params(k_p, C, ratio=8)

    out = squeeze_excitation(x, params)
    out = jax.block_until_ready(out)

    ref = jax.block_until_ready(reference(x, params))
    assert out.shape == (B, C, H, W)
    np.testing.assert_allclose(np.asarray(out), np.asarray(ref),
                               rtol=1e-5, atol=1e-5)
    print("KERNEL_OK")
</pallas_src>

<mosaic_0001>
module attributes {stable_mosaic.version = 11 : i64} {
  func.func @_se_kernel(%arg0: i32, %arg1: memref<1x16x256xf32, #tpu.memory_space<vmem>>, %arg2: memref<16x2xf32, #tpu.memory_space<vmem>>, %arg3: memref<1x2xf32, #tpu.memory_space<vmem>>, %arg4: memref<2x16xf32, #tpu.memory_space<vmem>>, %arg5: memref<1x16xf32, #tpu.memory_space<vmem>>, %arg6: memref<16x1xf32, #tpu.memory_space<vmem>>, %arg7: memref<1x1xf32, #tpu.memory_space<smem>>, %arg8: memref<1x16x256xf32, #tpu.memory_space<vmem>>) attributes {dimension_semantics = [#tpu.dimension_semantics<parallel>], iteration_bounds = array<i64: 2>, scalar_prefetch = 0 : i64, scratch_operands = 0 : i64, tpu.core_type = #tpu.core_type<tc>, window_params = [{transform_indices = @transform_0, window_bounds = array<i64: 1, 16, 256>}, {pipeline_mode = #tpu.pipeline_mode<synchronous>, transform_indices = @transform_1, window_bounds = array<i64: 16, 2>}, {pipeline_mode = #tpu.pipeline_mode<synchronous>, transform_indices = @transform_2, window_bounds = array<i64: 1, 2>}, {pipeline_mode = #tpu.pipeline_mode<synchronous>, transform_indices = @transform_3, window_bounds = array<i64: 2, 16>}, {pipeline_mode = #tpu.pipeline_mode<synchronous>, transform_indices = @transform_4, window_bounds = array<i64: 1, 16>}, {pipeline_mode = #tpu.pipeline_mode<synchronous>, transform_indices = @transform_5, window_bounds = array<i64: 16, 1>}, {transform_indices = @transform_6, window_bounds = array<i64: 1, 1>}, {transform_indices = @transform_7, window_bounds = array<i64: 1, 16, 256>}]} {
    %c0 = arith.constant 0 : index
    %c0_0 = arith.constant 0 : index
    %c0_1 = arith.constant 0 : index
    %0 = vector.load %arg1[%c0, %c0_0, %c0_1] : memref<1x16x256xf32, #tpu.memory_space<vmem>>, vector<1x16x256xf32>
    %cst = arith.constant dense<0.000000e+00> : vector<1x16xf32>
    %1 = vector.multi_reduction <add>, %0, %cst [2] : vector<1x16x256xf32> to vector<1x16xf32>
    %cst_2 = arith.constant 3.906250e-03 : f32
    %2 = vector.broadcast %cst_2 : f32 to vector<1x16xf32>
    %3 = arith.mulf %1, %2 : vector<1x16xf32>
    %c0_3 = arith.constant 0 : index
    %c0_4 = arith.constant 0 : index
    %4 = vector.load %arg2[%c0_3, %c0_4] : memref<16x2xf32, #tpu.memory_space<vmem>>, vector<16x2xf32>
    %cst_5 = arith.constant dense<0.000000e+00> : vector<1x2xf32>
    %5 = tpu.matmul %3, %4, %cst_5 {dimension_numbers = #tpu.dot_dimension_numbers<[1], [0], [0], [1], [0, 0, 1, 1], [], []>} : vector<1x16xf32>, vector<16x2xf32>, vector<1x2xf32> -> vector<1x2xf32>
    %c0_6 = arith.constant 0 : index
    %c0_7 = arith.constant 0 : index
    %6 = vector.load %arg3[%c0_6, %c0_7] : memref<1x2xf32, #tpu.memory_space<vmem>>, vector<1x2xf32>
    %7 = arith.addf %5, %6 : vector<1x2xf32>
    %cst_8 = arith.constant 0.000000e+00 : f32
    %8 = vector.broadcast %cst_8 : f32 to vector<1x2xf32>
    %9 = arith.maximumf %7, %8 : vector<1x2xf32>
    %c0_9 = arith.constant 0 : index
    %c0_10 = arith.constant 0 : index
    %10 = vector.load %arg4[%c0_9, %c0_10] : memref<2x16xf32, #tpu.memory_space<vmem>>, vector<2x16xf32>
    %cst_11 = arith.constant dense<0.000000e+00> : vector<1x16xf32>
    %11 = tpu.matmul %9, %10, %cst_11 {dimension_numbers = #tpu.dot_dimension_numbers<[1], [0], [0], [1], [0, 0, 1, 1], [], []>} : vector<1x2xf32>, vector<2x16xf32>, vector<1x16xf32> -> vector<1x16xf32>
    %c0_12 = arith.constant 0 : index
    %c0_13 = arith.constant 0 : index
    %12 = vector.load %arg5[%c0_12, %c0_13] : memref<1x16xf32, #tpu.memory_space<vmem>>, vector<1x16xf32>
    %13 = arith.addf %11, %12 : vector<1x16xf32>
    %14 = arith.negf %13 : vector<1x16xf32>
    %15 = math.exp %14 : vector<1x16xf32>
    %cst_14 = arith.constant 1.000000e+00 : f32
    %16 = vector.broadcast %cst_14 : f32 to vector<1x16xf32>
    %17 = arith.addf %16, %15 : vector<1x16xf32>
    %18 = arith.divf %16, %17 : vector<1x16xf32>
    %c0_15 = arith.constant 0 : index
    %c0_16 = arith.constant 0 : index
    %19 = vector.load %arg6[%c0_15, %c0_16] : memref<16x1xf32, #tpu.memory_space<vmem>>, vector<16x1xf32>
    %20 = vector.shape_cast %19 : vector<16x1xf32> to vector<1x16x1xf32>
    %21 = vector.broadcast %20 : vector<1x16x1xf32> to vector<1x16x256xf32>
    %22 = arith.mulf %21, %0 : vector<1x16x256xf32>
    %cst_17 = arith.constant dense<0.000000e+00> : vector<1x256xf32>
    %23 = vector.multi_reduction <add>, %22, %cst_17 [1] : vector<1x16x256xf32> to vector<1x256xf32>
    %24 = vector.shape_cast %23 : vector<1x256xf32> to vector<1x1x256xf32>
    %c0_18 = arith.constant 0 : index
    %c0_19 = arith.constant 0 : index
    %25 = memref.load %arg7[%c0_18, %c0_19] : memref<1x1xf32, #tpu.memory_space<smem>>
    %26 = vector.broadcast %25 : f32 to vector<1x1x256xf32>
    %27 = arith.addf %24, %26 : vector<1x1x256xf32>
    %28 = arith.negf %27 : vector<1x1x256xf32>
    %29 = math.exp %28 : vector<1x1x256xf32>
    %cst_20 = arith.constant 1.000000e+00 : f32
    %30 = vector.broadcast %cst_20 : f32 to vector<1x1x256xf32>
    %31 = arith.addf %30, %29 : vector<1x1x256xf32>
    %32 = arith.divf %30, %31 : vector<1x1x256xf32>
    %33 = vector.shape_cast %18 : vector<1x16xf32> to vector<1x16x1xf32>
    %34 = vector.broadcast %33 : vector<1x16x1xf32> to vector<1x16x256xf32>
    %35 = vector.broadcast %32 : vector<1x1x256xf32> to vector<1x16x256xf32>
    %36 = arith.addf %34, %35 : vector<1x16x256xf32>
    %37 = arith.mulf %36, %0 : vector<1x16x256xf32>
    %c0_21 = arith.constant 0 : index
    %c0_22 = arith.constant 0 : index
    %c0_23 = arith.constant 0 : index
    %38 = vector.load %arg8[%c0_21, %c0_22, %c0_23] : memref<1x16x256xf32, #tpu.memory_space<vmem>>, vector<1x16x256xf32>
    tpu.vector_store %arg8[%c0_21, %c0_22, %c0_23], %37 {strides = array<i32>} : memref<1x16x256xf32, #tpu.memory_space<vmem>>, vector<1x16x256xf32>,
    return
  }
  func.func @transform_0(%arg0: i32) -> (i32, i32, i32) {
    %c0_i32 = arith.constant 0 : i32
    %c0_i32_0 = arith.constant 0 : i32
    %c0_i32_1 = arith.constant 0 : i32
    return %arg0, %c0_i32, %c0_i32_0 : i32, i32, i32
  }
  func.func @transform_1(%arg0: i32) -> (i32, i32) {
    %c0_i32 = arith.constant 0 : i32
    %c0_i32_0 = arith.constant 0 : i32
    %c0_i32_1 = arith.constant 0 : i32
    return %c0_i32, %c0_i32_0 : i32, i32
  }
  func.func @transform_2(%arg0: i32) -> (i32, i32) {
    %c0_i32 = arith.constant 0 : i32
    %c0_i32_0 = arith.constant 0 : i32
    %c0_i32_1 = arith.constant 0 : i32
    return %c0_i32, %c0_i32_0 : i32, i32
  }
  func.func @transform_3(%arg0: i32) -> (i32, i32) {
    %c0_i32 = arith.constant 0 : i32
    %c0_i32_0 = arith.constant 0 : i32
    %c0_i32_1 = arith.constant 0 : i32
    return %c0_i32, %c0_i32_0 : i32, i32
  }
  func.func @transform_4(%arg0: i32) -> (i32, i32) {
    %c0_i32 = arith.constant 0 : i32
    %c0_i32_0 = arith.constant 0 : i32
    %c0_i32_1 = arith.constant 0 : i32
    return %c0_i32, %c0_i32_0 : i32, i32
  }
  func.func @transform_5(%arg0: i32) -> (i32, i32) {
    %c0_i32 = arith.constant 0 : i32
    %c0_i32_0 = arith.constant 0 : i32
    %c0_i32_1 = arith.constant 0 : i32
    return %c0_i32, %c0_i32_0 : i32, i32
  }
  func.func @transform_6(%arg0: i32) -> (i32, i32) {
    %c0_i32 = arith.constant 0 : i32
    %c0_i32_0 = arith.constant 0 : i32
    %c0_i32_1 = arith.constant 0 : i32
    return %c0_i32, %c0_i32_0 : i32, i32
  }
  func.func @transform_7(%arg0: i32) -> (i32, i32, i32) {
    %c0_i32 = arith.constant 0 : i32
    %c0_i32_0 = arith.constant 0 : i32
    %c0_i32_1 = arith.constant 0 : i32
    return %arg0, %c0_i32, %c0_i32_0 : i32, i32, i32
  }
}

</mosaic_0001>

<llo_original>
// kernel: tpu_custom_call.1
$region0: #{tpu_custom_call.1}
  #allocation0 [shape = 'u32[]', space=smem, size = 0x4, offset = 0x4, fixed_abs, tag = 'smem constant byte address 0x4 - core index']
  #allocation1 [shape = 'u32[144,128]{1,0:T(1,128)}', space=vmem, size = 0x12000, scoped, tag = 'internal scratch']
  #allocation2 [shape = 'f32[1,1]{1,0:T(1,128)S(6)}', space=smem, size = 0x200, scoped, tag = 'scoped memory for tpu_custom_call.1']
  %s0 = inlined_call_operand.hbm [shape: f32[2,16,256], index: 0, kind: input, shape index: {}]
  %s1 = inlined_call_operand.vmem [shape: f32[16,2], index: 1, kind: input, shape index: {}]
  %s2 = inlined_call_operand.vmem [shape: f32[1,2], index: 2, kind: input, shape index: {}]
  %s3 = inlined_call_operand.vmem [shape: f32[2,16], index: 3, kind: input, shape index: {}]
  %s4 = inlined_call_operand.vmem [shape: f32[1,16], index: 4, kind: input, shape index: {}]
  %s5 = inlined_call_operand.vmem [shape: f32[16,1], index: 5, kind: input, shape index: {}]
  %s6 = inlined_call_operand.<no memory space> [shape: f32[1,1], index: 6, kind: input, shape index: {}]
  %s7 = inlined_call_operand.hbm [shape: f32[2,16,256], index: 7, kind: output, shape index: {}]
  %s8 = sld [smem:[#allocation0]]
  $region65: #{tpu_custom_call.1} parent=0
    _
  %s10 = ssub.s32 1, %s8
  %s11 = scalar_select 0, %s10, %s8
  %12 = sst [smem:[#allocation2]] %s6
  $region1: #{tpu_custom_call.1} parent=0
    #allocation3 [shape = 'u8[32768]{0}', space=vmem, size = 0x8000, scoped, tag = 'input window, operand 0']
    #allocation4 [shape = 's32[2]{0}', space=sflag, size = 0x8, scoped, tag = 'scoped memory for tpu_custom_call.1']
    #allocation5 [shape = 's32[2]{0}', space=sflag, size = 0x8, scoped, tag = 'scoped memory for tpu_custom_call.1']
    #allocation6 [shape = 'u8[32768]{0}', space=vmem, size = 0x8000, scoped, tag = 'output window, operand 0']
    %13 = vsyncpa [#allocation4], 0
    %s14 = scalar_lea.sflag [#allocation4], 1
    %15 = vsyncpa %s14, 0
    %16 = vsyncpa [#allocation5], 0
    %s17 = scalar_lea.sflag [#allocation5], 1
    %18 = vsyncpa %s17, 0
    loop: start=0, step=1, limit=4
    $region2: #{tpu_custom_call.1} parent=1 // loop_pre_header
      _
    $region3: #{tpu_custom_call.1} parent=1 // loop_header
      %s20 = sphi 0, %s24
      %p21 = scmp.ge.s32.totalorder %s20, 4
      %s30 = sphi 0, %s32
      %s33 = sphi 0, %s30
      %s34 = sphi 0, %s33
      %s50 = sphi 0, %s34
      %s54 = sphi 0, %s54
      %s56 = sphi 0, %s54
      %s57 = sphi 0, %s56
      %s71 = sphi 0, %s57
      %s75 = sphi 0, %s75
      %s77 = sphi 0, %s75
      %s78 = sphi 0, %s77
      %s92 = sphi 0, %s78
      %s96 = sphi 0, %s96
      %s98 = sphi 0, %s96
      %s99 = sphi 0, %s98
      %s113 = sphi 0, %s99
      %s117 = sphi 0, %s117
      %s119 = sphi 0, %s117
      %s120 = sphi 0, %s119
      %s134 = sphi 0, %s120
      %s138 = sphi 0, %s138
      %s140 = sphi 0, %s138
      %s141 = sphi 0, %s140
      %s155 = sphi 0, %s141
      %s159 = sphi 0, %s159
      %s161 = sphi 0, %s159
      %s162 = sphi 0, %s161
      %s176 = sphi 0, %s162
      %s182 = sphi 0, %s184
      %s185 = sphi 0, %s182
      %s186 = sphi 0, %s185
      %s202 = sphi 0, %s186
    $region4: #{tpu_custom_call.1} parent=1 // loop_header_branch
      %23 = sbr.rel (%p21) target = $region8
    $region5: #{tpu_custom_call.1} parent=1 // loop_body
      %s25 = ssub.s32 %s20, 1
      %s26 = ssub.s32 %s20, 2
      %s27 = sadd.s32 %s20, 1
      %s28 = ssub.s32 %s20, %s27
      %p29 = scmp.eq.s32.totalorder %s28, 0
      %s31 = sadd.s32 %s30, 1
      %s32 = scalar_select %p29, %s30, %s31
      %p35 = pneg %p29
      %p36 = scmp.eq.s32.totalorder %s20, 1
      %p37 = por %p35, %p36
      %p38 = scmp.ne.s32.totalorder %s30, %s33
      %p39 = scmp.eq.s32.totalorder %s20, 0
      %p40 = por %p38, %p39
      %p41 = scmp.ne.s32.totalorder %s30, %s33
      %p42 = scmp.eq.s32.totalorder %s25, 1
      %p43 = por %p41, %p42
      %p44 = scmp.ne.s32.totalorder %s33, %s34
      %p45 = scmp.eq.s32.totalorder %s25, 0
      %p46 = por %p44, %p45
      %p47 = scmp.ne.s32.totalorder %s33, %s34
      %p48 = scmp.eq.s32.totalorder %s26, 1
      %p49 = por %p47, %p48
      %p51 = scmp.ne.s32.totalorder %s34, %s50
      %p52 = scmp.eq.s32.totalorder %s26, 0
      %p53 = por %p51, %p52
      %s55 = sadd.s32 %s54, 1
      %p58 = scmp.eq.s32.totalorder %s20, 1
      %p59 = scmp.ne.s32.totalorder %s54, %s56
      %p60 = scmp.eq.s32.totalorder %s20, 0
      %p61 = por %p59, %p60
      %p62 = scmp.ne.s32.totalorder %s54, %s56
      %p63 = scmp.eq.s32.totalorder %s25, 1
      %p64 = por %p62, %p63
      %p65 = scmp.ne.s32.totalorder %s56, %s57
      %p66 = scmp.eq.s32.totalorder %s25, 0
      %p67 = por %p65, %p66
      %p68 = scmp.ne.s32.totalorder %s56, %s57
      %p69 = scmp.eq.s32.totalorder %s26, 1
      %p70 = por %p68, %p69
      %p72 = scmp.ne.s32.totalorder %s57, %s71
      %p73 = scmp.eq.s32.totalorder %s26, 0
      %p74 = por %p72, %p73
      %s76 = sadd.s32 %s75, 1
      %p79 = scmp.eq.s32.totalorder %s20, 1
      %p80 = scmp.ne.s32.totalorder %s75, %s77
      %p81 = scmp.eq.s32.totalorder %s20, 0
      %p82 = por %p80, %p81
      %p83 = scmp.ne.s32.totalorder %s75, %s77
      %p84 = scmp.eq.s32.totalorder %s25, 1
      %p85 = por %p83, %p84
      %p86 = scmp.ne.s32.totalorder %s77, %s78
      %p87 = scmp.eq.s32.totalorder %s25, 0
      %p88 = por %p86, %p87
      %p89 = scmp.ne.s32.totalorder %s77, %s78
      %p90 = scmp.eq.s32.totalorder %s26, 1
      %p91 = por %p89, %p90
      %p93 = scmp.ne.s32.totalorder %s78, %s92
      %p94 = scmp.eq.s32.totalorder %s26, 0
      %p95 = por %p93, %p94
      %s97 = sadd.s32 %s96, 1
      %p100 = scmp.eq.s32.totalorder %s20, 1
      %p101 = scmp.ne.s32.totalorder %s96, %s98
      %p102 = scmp.eq.s32.totalorder %s20, 0
      %p103 = por %p101, %p102
      %p104 = scmp.ne.s32.totalorder %s96, %s98
      %p105 = scmp.eq.s32.totalorder %s25, 1
      %p106 = por %p104, %p105
      %p107 = scmp.ne.s32.totalorder %s98, %s99
      %p108 = scmp.eq.s32.totalorder %s25, 0
      %p109 = por %p107, %p108
      %p110 = scmp.ne.s32.totalorder %s98, %s99
      %p111 = scmp.eq.s32.totalorder %s26, 1
      %p112 = por %p110, %p111
      %p114 = scmp.ne.s32.totalorder %s99, %s113
      %p115 = scmp.eq.s32.totalorder %s26, 0
      %p116 = por %p114, %p115
      %s118 = sadd.s32 %s117, 1
      %p121 = scmp.eq.s32.totalorder %s20, 1
      %p122 = scmp.ne.s32.totalorder %s117, %s119
      %p123 = scmp.eq.s32.totalorder %s20, 0
      %p124 = por %p122, %p123
      %p125 = scmp.ne.s32.totalorder %s117, %s119
      %p126 = scmp.eq.s32.totalorder %s25, 1
      %p127 = por %p125, %p126
      %p128 = scmp.ne.s32.totalorder %s119, %s120
      %p129 = scmp.eq.s32.totalorder %s25, 0
      %p130 = por %p128, %p129
      %p131 = scmp.ne.s32.totalorder %s119, %s120
      %p132 = scmp.eq.s32.totalorder %s26, 1
      %p133 = por %p131, %p132
      %p135 = scmp.ne.s32.totalorder %s120, %s134
      %p136 = scmp.eq.s32.totalorder %s26, 0
      %p137 = por %p135, %p136
      %s139 = sadd.s32 %s138, 1
      %p142 = scmp.eq.s32.totalorder %s20, 1
      %p143 = scmp.ne.s32.totalorder %s138, %s140
      %p144 = scmp.eq.s32.totalorder %s20, 0
      %p145 = por %p143, %p144
      %p146 = scmp.ne.s32.totalorder %s138, %s140
      %p147 = scmp.eq.s32.totalorder %s25, 1
      %p148 = por %p146, %p147
      %p149 = scmp.ne.s32.totalorder %s140, %s141
      %p150 = scmp.eq.s32.totalorder %s25, 0
      %p151 = por %p149, %p150
      %p152 = scmp.ne.s32.totalorder %s140, %s141
      %p153 = scmp.eq.s32.totalorder %s26, 1
      %p154 = por %p152, %p153
      %p156 = scmp.ne.s32.totalorder %s141, %s155
      %p157 = scmp.eq.s32.totalorder %s26, 0
      %p158 = por %p156, %p157
      %s160 = sadd.s32 %s159, 1
      %p163 = scmp.eq.s32.totalorder %s20, 1
      %p164 = scmp.ne.s32.totalorder %s159, %s161
      %p165 = scmp.eq.s32.totalorder %s20, 0
      %p166 = por %p164, %p165
      %p167 = scmp.ne.s32.totalorder %s159, %s161
      %p168 = scmp.eq.s32.totalorder %s25, 1
      %p169 = por %p167, %p168
      %p170 = scmp.ne.s32.totalorder %s161, %s162
      %p171 = scmp.eq.s32.totalorder %s25, 0
      %p172 = por %p170, %p171
      %p173 = scmp.ne.s32.totalorder %s161, %s162
      %p174 = scmp.eq.s32.totalorder %s26, 1
      %p175 = por %p173, %p174
      %p177 = scmp.ne.s32.totalorder %s162, %s176
      %p178 = scmp.eq.s32.totalorder %s26, 0
      %p179 = por %p177, %p178
      %s180 = ssub.s32 %s20, %s27
      %p181 = scmp.eq.s32.totalorder %s180, 0
      %s183 = sadd.s32 %s182, 1
      %s184 = scalar_select %p181, %s182, %s183
      %p187 = pneg %p181
      %p188 = scmp.eq.s32.totalorder %s20, 1
      %p189 = por %p187, %p188
      %p190 = scmp.ne.s32.totalorder %s182, %s185
      %p191 = scmp.eq.s32.totalorder %s20, 0
      %p192 = por %p190, %p191
      %p193 = scmp.ne.s32.totalorder %s182, %s185
      %p194 = scmp.eq.s32.totalorder %s25, 1
      %p195 = por %p193, %p194
      %p196 = scmp.ne.s32.totalorder %s185, %s186
      %p197 = scmp.eq.s32.totalorder %s25, 0
      %p198 = por %p196, %p197
      %p199 = scmp.ne.s32.totalorder %s185, %s186
      %p200 = scmp.eq.s32.totalorder %s26, 1
      %p201 = por %p199, %p200
      %p203 = scmp.ne.s32.totalorder %s186, %s202
      %p204 = scmp.eq.s32.totalorder %s26, 0
      %p205 = por %p203, %p204
      %p206 = scmp.le.s32.totalorder 1, %s20
      %p207 = scmp.lt.s32.totalorder %s20, 3
      %p208 = pnand %p206, %p207
      %p209 = pneg %p208
      // Predicated region
      $region9: #{tpu_custom_call.1} parent=5 // pred_check
        _
      $region10: #{tpu_custom_call.1} parent=5 // pred_check_branch
        %211 = sbr.rel (%p208) target = $region12
      $region11: #{tpu_custom_call.1} parent=5 // pred_region
        %s212 = ssub.s32 %s20, 1
        // Predicated region
        $region13: #{tpu_custom_call.1} parent=11 // pred_check
          %p213 = pneg %p67
        $region14: #{tpu_custom_call.1} parent=11 // pred_check_branch
          %215 = sbr.rel (%p213) target = $region16
        $region15: #{tpu_custom_call.1} parent=11 // pred_region
          _
        $region16: #{tpu_custom_call.1} parent=11 // pred_fallthru
          _
        // Predicated region
        $region17: #{tpu_custom_call.1} parent=11 // pred_check
          %p216 = pneg %p88
        $region18: #{tpu_custom_call.1} parent=11 // pred_check_branch
          %218 = sbr.rel (%p216) target = $region20
        $region19: #{tpu_custom_call.1} parent=11 // pred_region
          _
        $region20: #{tpu_custom_call.1} parent=11 // pred_fallthru
          _
        // Predicated region
        $region21: #{tpu_custom_call.1} parent=11 // pred_check
          %p219 = pneg %p109
        $region22: #{tpu_custom_call.1} parent=11 // pred_check_branch
          %221 = sbr.rel (%p219) target = $region24
        $region23: #{tpu_custom_call.1} parent=11 // pred_region
          _
        $region24: #{tpu_custom_call.1} parent=11 // pred_fallthru
          _
        // Predicated region
        $region25: #{tpu_custom_call.1} parent=11 // pred_check
          %p222 = pneg %p130
        $region26: #{tpu_custom_call.1} parent=11 // pred_check_branch
          %224 = sbr.rel (%p222) target = $region28
        $region27: #{tpu_custom_call.1} parent=11 // pred_region
          _
        $region28: #{tpu_custom_call.1} parent=11 // pred_fallthru
          _
        // Predicated region
        $region29: #{tpu_custom_call.1} parent=11 // pred_check
          %p225 = pneg %p151
        $region30: #{tpu_custom_call.1} parent=11 // pred_check_branch
          %227 = sbr.rel (%p225) target = $region32
        $region31: #{tpu_custom_call.1} parent=11 // pred_region
          _
        $region32: #{tpu_custom_call.1} parent=11 // pred_fallthru
          _
        // Predicated region
        $region33: #{tpu_custom_call.1} parent=11 // pred_check
          %p228 = pneg %p172
        $region34: #{tpu_custom_call.1} parent=11 // pred_check_branch
          %230 = sbr.rel (%p228) target = $region36
        $region35: #{tpu_custom_call.1} parent=11 // pred_region
          _
        $region36: #{tpu_custom_call.1} parent=11 // pred_fallthru
          _
      $region12: #{tpu_custom_call.1} parent=5 // pred_fallthru
        _
      %p231 = scmp.lt.s32.totalorder %s20, 2
      // Predicated region
      $region37: #{tpu_custom_call.1} parent=5 // pred_check
        %p232 = pneg %p231
      $region38: #{tpu_custom_call.1} parent=5 // pred_check_branch
        %234 = sbr.rel (%p232) target = $region40
      $region39: #{tpu_custom_call.1} parent=5 // pred_region
        // Predicated region
        $region41: #{tpu_custom_call.1} parent=39 // pred_check
          %p235 = pneg %p40
        $region42: #{tpu_custom_call.1} parent=39 // pred_check_branch
          %237 = sbr.rel (%p235) target = $region44
        $region43: #{tpu_custom_call.1} parent=39 // pred_region
          %s238 = sand.u32 %s30, 1
          %s239 = scalar_lea.sflag [#allocation4], %s238
          %s240 = sand.u32 %s30, 1
          %s241 = smul.addr %s240, 32
          %s242 = scalar_lea.vmem [#allocation3], %s241
          %s244 = ssub.s32 512, 512
          %245 = vsyncadd %s239, %s244
          %s246 = smul.addr %s20, 4
          %s247 = smul.addr %s246, 128
          %s248 = scalar_lea.hbm %s0, %s247
          %s249 = sshll.u32 %s242, 4
          %s250 = int_to_ptr.vmem [resolvable:$true] %s249
          %255 = dma.hbm_to_vmem [thread:$0]  %s248, 512, %s250, %s239, 256, 256, 16
        $region44: #{tpu_custom_call.1} parent=39 // pred_fallthru
          _
      $region40: #{tpu_custom_call.1} parent=5 // pred_fallthru
        _
      %p256 = scmp.le.s32.totalorder 1, %s20
      %p257 = scmp.lt.s32.totalorder %s20, 3
      %p258 = pnand %p256, %p257
      %p259 = pneg %p258
      // Predicated region
      $region45: #{tpu_custom_call.1} parent=5 // pred_check
        _
      $region46: #{tpu_custom_call.1} parent=5 // pred_check_branch
        %261 = sbr.rel (%p258) target = $region48
      $region47: #{tpu_custom_call.1} parent=5 // pred_region
        %s262 = ssub.s32 %s20, 1
        %s263 = sand.u32 %s33, 1
        %s264 = scalar_lea.sflag [#allocation4], %s263
        %s265 = sand.u32 %s33, 1
        %s266 = smul.addr %s265, 32
        %s267 = scalar_lea.vmem [#allocation3], %s266
        // Predicated region
        $region49: #{tpu_custom_call.1} parent=47 // pred_check
          %p268 = pneg %p46
        $region50: #{tpu_custom_call.1} parent=47 // pred_check_branch
          %270 = sbr.rel (%p268) target = $region52
        $region51: #{tpu_custom_call.1} parent=47 // pred_region
          %271 = dma.done %s264, 512
        $region52: #{tpu_custom_call.1} parent=47 // pred_fallthru
          _
        %s272 = sand.u32 %s33, 1
        %s273 = scalar_lea.sflag [#allocation4], %s272
        %s274 = sand.u32 %s33, 1
        %s275 = smul.addr %s274, 32
        %s276 = scalar_lea.vmem [#allocation3], %s275
        %p277 = pneg %p46
        %p278 = pneg %p43
        %p279 = pneg %p67
        %p280 = pneg %p64
        %p281 = pneg %p88
        %p282 = pneg %p85
        %p283 = pneg %p109
        %p284 = pneg %p106
        %p285 = pneg %p130
        %p286 = pneg %p127
        %p287 = pneg %p151
        %p288 = pneg %p148
        %p289 = pneg %p172
        %p290 = pneg %p169
        %p291 = pneg %p198
        %p292 = pneg %p195
        %s293 = sand.u32 %s185, 1
        %s294 = scalar_lea.sflag [#allocation5], %s293
        %s295 = sand.u32 %s185, 1
        %s296 = smul.addr %s295, 32
        %s297 = scalar_lea.vmem [#allocation6], %s296
        %v298 = vld [vmem:[%s267] sm:$0xff]
        %v299 = vld [vmem:[%s267 + $0x8] sm:$0xff]
        %v300 = vld [vmem:[%s267 + $0x10] sm:$0xff]
        %v301 = vld [vmem:[%s267 + $0x18] sm:$0xff]
        %v302 = vadd.f32 %v298, %v299
        %303 = vadd.xlane.f32.xlu0 %v302
        %v304 = vpop.xlane.xlu0 %303
        %v305 = vadd.f32 %v300, %v301
        %306 = vadd.xlane.f32.xlu0 %v305
        %v307 = vpop.xlane.xlu0 %306
        %v308 = vmul.f32 %v304, 0.00390625
        %v309 = vmul.f32 %v307, 0.00390625
        %v310 = vld [vmem:[%s1] sm:$0xff]
        %v311 = vld [vmem:[%s1 + $0x8] sm:$0xff]
        %v312 = vld [vmem:[%s2] sm:$0x1]
        %v315 = vlaneseq
        %v316 = vand.u32 %v315, 127
        %v317 = vlaneseq
        %v318 = vshrl.u32 %v317, 7
        %v319 = vsub.s32 %v316, %v318
        %v320 = vrot.slane %v308, %v319
        %v321 = vadd.s32 %v316, 4294967288
        %v322 = vlaneseq
        %v323 = vshrl.u32 %v322, 7
        %v324 = vsub.s32 %v321, %v323
        %v325 = vrot.slane %v309, %v324
        %vm326 = vcmask 130112
        %v327 = vsel %vm326, %v325, %v320
        %vm328 = vcmask 130048
        %v329 = vsel %vm328, %v327, 0
        %331 = vmatprep.subr.mxu0 0.0
        %332 = vmatpush1.msra.mxu0 %v310
        %333 = vmatprep.subr.mxu0 0.0
        %334 = vmatpush1.msra.mxu0 %v311
        %335 = vmatprep.subr.mxu0 0.0
        %336 = vmatpush1.msra.mxu0 0.0
        %337 = vmatprep.subr.mxu0 0.0
        %338 = vmatpush1.msra.mxu0 0.0
        %339 = vmatprep.subr.mxu0 0.0
        %340 = vmatpush1.msra.mxu0 0.0
        %341 = vmatprep.subr.mxu0 0.0
        %342 = vmatpush1.msra.mxu0 0.0
        %343 = vmatprep.subr.mxu0 0.0
        %344 = vmatpush1.msra.mxu0 0.0
        %345 = vmatprep.subr.mxu0 0.0
        %346 = vmatpush1.msra.mxu0 0.0
        %347 = vmatprep.subr.mxu0 0.0
        %348 = vmatpush1.msra.mxu0 0.0
        %349 = vmatprep.subr.mxu0 0.0
        %350 = vmatpush1.msra.mxu0 0.0
        %351 = vmatprep.subr.mxu0 0.0
        %352 = vmatpush1.msra.mxu0 0.0
        %353 = vmatprep.subr.mxu0 0.0
        %354 = vmatpush1.msra.mxu0 0.0
        %355 = vmatprep.subr.mxu0 0.0
        %356 = vmatpush1.msra.mxu0 0.0
        %357 = vmatprep.subr.mxu0 0.0
        %358 = vmatpush1.msra.mxu0 0.0
        %359 = vmatprep.subr.mxu0 0.0
        %360 = vmatpush1.msra.mxu0 0.0
        %361 = vmatprep.subr.mxu0 0.0
        %362 = vmatpush1.msra.mxu0 0.0
        %363 = vmatprep.subr.mxu0 0.0
        %364 = vmatpush1.msra.mxu0 0.0
        %365 = vmatprep.subr.mxu0 0.0
        %366 = vmatpush1.msra.mxu0 0.0
        %367 = vmatprep.subr.mxu0 0.0
        %368 = vmatpush1.msra.mxu0 0.0
        %369 = vmatprep.subr.mxu0 0.0
        %370 = vmatpush1.msra.mxu0 0.0
        %371 = vmatprep.subr.mxu0 0.0
        %372 = vmatpush1.msra.mxu0 0.0
        %373 = vmatprep.subr.mxu0 0.0
        %374 = vmatpush1.msra.mxu0 0.0
        %375 = vmatprep.subr.mxu0 0.0
        %376 = vmatpush1.msra.mxu0 0.0
        %377 = vmatprep.subr.mxu0 0.0
        %378 = vmatpush1.msra.mxu0 0.0
        %379 = vmatprep.subr.mxu0 0.0
        %380 = vmatpush1.msra.mxu0 0.0
        %381 = vmatprep.subr.mxu0 0.0
        %382 = vmatpush1.msra.mxu0 0.0
        %383 = vmatprep.subr.mxu0 0.0
        %384 = vmatpush1.msra.mxu0 0.0
        %385 = vmatprep.subr.mxu0 0.0
        %386 = vmatpush1.msra.mxu0 0.0
        %387 = vmatprep.subr.mxu0 0.0
        %388 = vmatpush1.msra.mxu0 0.0
        %389 = vmatprep.subr.mxu0 0.0
        %390 = vmatpush1.msra.mxu0 0.0
        %391 = vmatprep.subr.mxu0 0.0
        %392 = vmatpush1.msra.mxu0 0.0
        %393 = vmatprep.subr.mxu0 0.0
        %394 = vmatpush1.msra.mxu0 0.0
        %395 = vmatprep.mubr.f32.mxu0 0.0
        %396 = vmatmul.mubr.f32.gmra.mrb[0].mxu0 %v329
        %v397 = vpop.f32.mrb[0].mxu0
        %v398 = vadd.f32 %v312, %v397
        %v399 = vpop.f32.mrb[0].mxu0
        %400 = vdwg.mxu0
        %v401 = vmax.f32 %v398, 0.0
        %v402 = vld [vmem:[%s3] sm:$0x3]
        %v403 = vld [vmem:[%s4] sm:$0x1]
        %vm404 = vcmask 15360
        %v406 = vsel %vm404, %v401, 0
        %vm408 = vcmask 1041408
        %v410 = vsel %vm408, %v402, 0
        %412 = vmatprep.subr.mxu0 0.0
        %413 = vmatpush1.msra.mxu0 %v410
        %414 = vmatprep.subr.mxu0 0.0
        %415 = vmatpush1.msra.mxu0 0.0
        %416 = vmatprep.subr.mxu0 0.0
        %417 = vmatpush1.msra.mxu0 0.0
        %418 = vmatprep.subr.mxu0 0.0
        %419 = vmatpush1.msra.mxu0 0.0
        %420 = vmatprep.subr.mxu0 0.0
        %421 = vmatpush1.msra.mxu0 0.0
        %422 = vmatprep.subr.mxu0 0.0
        %423 = vmatpush1.msra.mxu0 0.0
        %424 = vmatprep.subr.mxu0 0.0
        %425 = vmatpush1.msra.mxu0 0.0
        %426 = vmatprep.subr.mxu0 0.0
        %427 = vmatpush1.msra.mxu0 0.0
        %428 = vmatprep.subr.mxu0 0.0
        %429 = vmatpush1.msra.mxu0 0.0
        %430 = vmatprep.subr.mxu0 0.0
        %431 = vmatpush1.msra.mxu0 0.0
        %432 = vmatprep.subr.mxu0 0.0
        %433 = vmatpush1.msra.mxu0 0.0
        %434 = vmatprep.subr.mxu0 0.0
        %435 = vmatpush1.msra.mxu0 0.0
        %436 = vmatprep.subr.mxu0 0.0
        %437 = vmatpush1.msra.mxu0 0.0
        %438 = vmatprep.subr.mxu0 0.0
        %439 = vmatpush1.msra.mxu0 0.0
        %440 = vmatprep.subr.mxu0 0.0
        %441 = vmatpush1.msra.mxu0 0.0
        %442 = vmatprep.subr.mxu0 0.0
        %443 = vmatpush1.msra.mxu0 0.0
        %444 = vmatprep.subr.mxu0 0.0
        %445 = vmatpush1.msra.mxu0 0.0
        %446 = vmatprep.subr.mxu0 0.0
        %447 = vmatpush1.msra.mxu0 0.0
        %448 = vmatprep.subr.mxu0 0.0
        %449 = vmatpush1.msra.mxu0 0.0
        %450 = vmatprep.subr.mxu0 0.0
        %451 = vmatpush1.msra.mxu0 0.0
        %452 = vmatprep.subr.mxu0 0.0
        %453 = vmatpush1.msra.mxu0 0.0
        %454 = vmatprep.subr.mxu0 0.0
        %455 = vmatpush1.msra.mxu0 0.0
        %456 = vmatprep.subr.mxu0 0.0
        %457 = vmatpush1.msra.mxu0 0.0
        %458 = vmatprep.subr.mxu0 0.0
        %459 = vmatpush1.msra.mxu0 0.0
        %460 = vmatprep.subr.mxu0 0.0
        %461 = vmatpush1.msra.mxu0 0.0
        %462 = vmatprep.subr.mxu0 0.0
        %463 = vmatpush1.msra.mxu0 0.0
        %464 = vmatprep.subr.mxu0 0.0
        %465 = vmatpush1.msra.mxu0 0.0
        %466 = vmatprep.subr.mxu0 0.0
        %467 = vmatpush1.msra.mxu0 0.0
        %468 = vmatprep.subr.mxu0 0.0
        %469 = vmatpush1.msra.mxu0 0.0
        %470 = vmatprep.subr.mxu0 0.0
        %471 = vmatpush1.msra.mxu0 0.0
        %472 = vmatprep.subr.mxu0 0.0
        %473 = vmatpush1.msra.mxu0 0.0
        %474 = vmatprep.subr.mxu0 0.0
        %475 = vmatpush1.msra.mxu0 0.0
        %476 = vmatprep.mubr.f32.mxu0 0.0
        %477 = vmatmul.mubr.f32.gmra.mrb[0].mxu0 %v406
        %v478 = vpop.f32.mrb[0].mxu0
        %v479 = vadd.f32 %v403, %v478
        %v480 = vpop.f32.mrb[0].mxu0
        %481 = vdwg.mxu0
        %v482 = vxor.u32 %v479, 2147483648
        %v483 = vmul.f32 %v482, 1.442695
        %v484 = vpow.pop %v483
        %v485 = vadd.f32 %v484, 1.0
        %v486 = vrcp.pop %v485
        %v487 = vmul.f32 1.0, %v486
        %v488 = vld [vmem:[%s5] sm:$0xff]
        %v489 = vld [vmem:[%s5 + $0x8] sm:$0xff]
        %491 = vset.pattern.permute.xlu0 0
        %492 = vperm.xlu0 %491, %v488
        %v493 = vpop.permute.xlu0 %492
        %496 = vset.pattern.permute.xlu0 0
        %497 = vperm.xlu0 %496, %v489
        %v498 = vpop.permute.xlu0 %497
        %v500 = vmul.f32 %v493, %v298
        %v501 = vmul.f32 %v493, %v299
        %v502 = vmul.f32 %v498, %v300
        %v503 = vmul.f32 %v498, %v301
        %v504 = vadd.f32 %v500, %v502
        %v505 = vrot.slane %v504, 4
        %v506 = vadd.f32 %v504, %v505
        %v507 = vrot.slane %v506, 2
        %v508 = vadd.f32 %v506, %v507
        %v509 = vrot.slane %v508, 1
        %v510 = vadd.f32 %v508, %v509
        %v511 = vadd.f32 %v501, %v503
        %v512 = vrot.slane %v511, 4
        %v513 = vadd.f32 %v511, %v512
        %v514 = vrot.slane %v513, 2
        %v515 = vadd.f32 %v513, %v514
        %v516 = vrot.slane %v515, 1
        %v517 = vadd.f32 %v515, %v516
        %s518 = sld [smem:[#allocation2]]
        %v519 = vstv %s518
        %v520 = vadd.f32 %v510, %v519
        %v521 = vadd.f32 %v517, %v519
        %v522 = vxor.u32 %v520, 2147483648
        %v523 = vxor.u32 %v521, 2147483648
        %v524 = vmul.f32 %v522, 1.442695
        %v525 = vpow.pop %v524
        %v526 = vmul.f32 %v523, 1.442695
        %v527 = vpow.pop %v526
        %v528 = vadd.f32 %v525, 1.0
        %v529 = vadd.f32 %v527, 1.0
        %v530 = vrcp.pop %v528
        %v531 = vmul.f32 1.0, %v530
        %v532 = vrcp.pop %v529
        %v533 = vmul.f32 1.0, %v532
        %v534 = vlaneseq
        %v535 = vshrl.u32 %v534, 7
        %v536 = vsub.s32 0, %v535
        %v537 = vrot.slane %v487, %v536
        %539 = vbcast.lane.b32.xlu0 %v537, 256
        %v540 = vpop.permute.xlu0 %539
        %s542 = sor.u32 256, 8
        %543 = vbcast.lane.b32.xlu0 %v537, %s542
        %v544 = vpop.permute.xlu0 %543
        %v545 = vadd.f32 %v540, %v531
        %v546 = vadd.f32 %v540, %v533
        %v547 = vadd.f32 %v544, %v531
        %v548 = vadd.f32 %v544, %v533
        %v549 = vmul.f32 %v545, %v298
        %v550 = vmul.f32 %v546, %v299
        %v551 = vmul.f32 %v547, %v300
        %v552 = vmul.f32 %v548, %v301
        %553 = vst [vmem:[%s297] sm:$0xff] %v549
        %554 = vst [vmem:[%s297 + $0x8] sm:$0xff] %v550
        %555 = vst [vmem:[%s297 + $0x10] sm:$0xff] %v551
        %556 = vst [vmem:[%s297 + $0x18] sm:$0xff] %v552
        %s557 = sand.u32 %s185, 1
        %s558 = scalar_lea.sflag [#allocation5], %s557
        %s559 = sand.u32 %s185, 1
        %s560 = smul.addr %s559, 32
        %s561 = scalar_lea.vmem [#allocation6], %s560
        // Predicated region
        $region53: #{tpu_custom_call.1} parent=47 // pred_check
          %p562 = pneg %p195
        $region54: #{tpu_custom_call.1} parent=47 // pred_check_branch
          %564 = sbr.rel (%p562) target = $region56
        $region55: #{tpu_custom_call.1} parent=47 // pred_region
          %s566 = ssub.s32 512, 512
          %567 = vsyncadd %s558, %s566
          %s568 = smul.addr %s25, 4
          %s569 = smul.addr %s568, 128
          %s570 = scalar_lea.hbm %s7, %s569
          %s571 = sshll.u32 %s561, 4
          %s572 = int_to_ptr.vmem [resolvable:$true] %s571
          %577 = dma.vmem_to_hbm [thread:$0]  %s572, 512, %s570, %s558, 256, 256, 16
        $region56: #{tpu_custom_call.1} parent=47 // pred_fallthru
          _
      $region48: #{tpu_custom_call.1} parent=5 // pred_fallthru
        _
      %p578 = scmp.le.s32.totalorder 2, %s20
      // Predicated region
      $region57: #{tpu_custom_call.1} parent=5 // pred_check
        %p579 = pneg %p578
      $region58: #{tpu_custom_call.1} parent=5 // pred_check_branch
        %581 = sbr.rel (%p579) target = $region60
      $region59: #{tpu_custom_call.1} parent=5 // pred_region
        %s582 = ssub.s32 %s20, 2
        // Predicated region
        $region61: #{tpu_custom_call.1} parent=59 // pred_check
          %p583 = pneg %p201
        $region62: #{tpu_custom_call.1} parent=59 // pred_check_branch
          %585 = sbr.rel (%p583) target = $region64
        $region63: #{tpu_custom_call.1} parent=59 // pred_region
          %s586 = sand.u32 %s186, 1
          %s587 = scalar_lea.sflag [#allocation5], %s586
          %s588 = sand.u32 %s186, 1
          %s589 = smul.addr %s588, 32
          %s590 = scalar_lea.vmem [#allocation6], %s589
          %591 = dma.done %s587, 512
        $region64: #{tpu_custom_call.1} parent=59 // pred_fallthru
          _
      $region60: #{tpu_custom_call.1} parent=5 // pred_fallthru
        _
    $region6: #{tpu_custom_call.1} parent=1 // loop_footer
      %s24 = sadd.s32 1, %s20
    $region7: #{tpu_custom_call.1} parent=1 // loop_footer_branch
      %19 = sbr.rel target = $region3
    $region8: #{tpu_custom_call.1} parent=1 // loop_exit
      _
    %592 = vsyncpa [#allocation4], 1
    %s593 = scalar_lea.sflag [#allocation4], 1
    %594 = vsyncpa %s593, 1
    %595 = vsyncpa [#allocation5], 1
    %s596 = scalar_lea.sflag [#allocation5], 1
    %597 = vsyncpa %s596, 1

</llo_original>
